<compile_context>
chip_gen: v5e
topology: v5e:2x2
jax: 0.10.0
libtpu: 0.0.40
codegen_flags: <defaults>
</compile_context>

<pallas_src>
import functools

import jax
import jax.numpy as jnp
from jax import lax
from jax.experimental import pallas as pl
from jax.experimental.pallas import tpu as pltpu


def _pos_embed_kernel(col_ref, row_ref, out_ref, *, h, w, hw_pad):
    """Builds the NCHW-native learned 2-D position-embedding slab.

    col_ref: (col_num_embed, C)  full column-embedding table (untransposed)
    row_ref: (row_num_embed, C)  full row-embedding table (untransposed)
    out_ref: (2C, hw_pad), hw_pad = round_up(h*w, 128).  For l = i*w + j < h*w:
        out[c, l]     = col_ref[j, c]   (c < C)
        out[C + c, l] = row_ref[i, c]   (c < C)
    Lanes l >= h*w are zero padding and are sliced away by the wrapper.
    """
    C = col_ref.shape[1]
    hw = h * w

    # Static sublane slices = the arange(w)/arange(h) embedding lookups.
    col = col_ref[:w, :].astype(jnp.float32)                 # (w, C)
    row = row_ref[:h, :].astype(jnp.float32)                 # (h, C)

    # ---- one-hot selectors, built on the VPU (no int div/mod, no reshape) ---
    # x half: S_col[j, l] = 1  iff  (l mod w == j) and (l < h*w).
    l_x = lax.broadcasted_iota(jnp.int32, (w, hw_pad), 1)
    j_x = lax.broadcasted_iota(jnp.int32, (w, hw_pad), 0)
    # i = floor((l + 0.25) / w) via f32 multiply-by-reciprocal; the +0.25
    # offset keeps the floor exact despite f32 rounding (valid while
    # w * (h*w) << 2^21 -- asserted in the wrapper).
    i_of_l = jnp.floor((l_x.astype(jnp.float32) + jnp.float32(0.25)) *
                       jnp.float32(1.0 / w)).astype(jnp.int32)
    j_of_l = l_x - w * i_of_l                                 # l mod w
    s_col = ((j_of_l == j_x) & (l_x < hw)).astype(jnp.float32)   # (w, hw_pad)

    # y half: S_row[i, l] = 1  iff  i*w <= l < (i+1)*w  (padded tail auto-zero).
    l_y = lax.broadcasted_iota(jnp.int32, (h, hw_pad), 1)
    i_y = lax.broadcasted_iota(jnp.int32, (h, hw_pad), 0)
    s_row = ((l_y >= i_y * w) & (l_y < (i_y + 1) * w)).astype(jnp.float32)

    # ---- MXU: contract over dim 0 of the untransposed tables (absorbs the
    # transpose); one-hot selection in f32 is bit-exact.
    dn = (((0,), (0,)), ((), ()))
    x_half = lax.dot_general(col, s_col, dn, preferred_element_type=jnp.float32)
    y_half = lax.dot_general(row, s_row, dn, preferred_element_type=jnp.float32)

    # Wide lane-dense (hw_pad % 128 == 0) unmasked stores.  The sublane offset
    # C is unmasked whenever C % 8 == 0 (true for module defaults); otherwise
    # it is merely a slower masked store -- still correct.
    out_ref[:C, :] = x_half.astype(out_ref.dtype)
    out_ref[C:, :] = y_half.astype(out_ref.dtype)


def position_embedding_learned(mask, col_weight, row_weight):
    """mask: (bs, h, w); col_weight: (col_num_embed, C); row_weight: (row_num_embed, C).

    Returns pos of shape (bs, 2*C, h, w) (PyTorch NCHW convention).
    Only mask.shape is used, matching the PyTorch module.
    """
    bs, h, w = mask.shape
    C = col_weight.shape[1]
    assert row_weight.shape[1] == C, "row/col embeddings must share num_pos_feats"
    assert w <= col_weight.shape[0], "w exceeds col_num_embed"
    assert h <= row_weight.shape[0], "h exceeds row_num_embed"
    # Exactness bound of the in-kernel f32 floor-division index trick
    # (trivially satisfied for the module's 50x50 embedding tables).
    assert w * (h * w) < (1 << 21), "feature map too large for f32 index trick"

    hw = h * w
    hw_pad = ((hw + 127) // 128) * 128
    out_dtype = jnp.promote_types(col_weight.dtype, row_weight.dtype)

    # VMEM footprint (single invocation, no pipelined grid): out slab
    # 2C*hw_pad*4 B + selector temps (w+h)*hw_pad*4 B + the two tables.
    # Module defaults (C=256, h=w=50): ~5.6 MiB -- far under v5e/v6e/v7x limits.
    # TODO(synk): tile over h with a grid axis if reused with C*h*w large
    # enough to approach v7x's 64 MiB physical VMEM.
    pos_slab = pl.pallas_call(
        functools.partial(_pos_embed_kernel, h=h, w=w, hw_pad=hw_pad),
        out_shape=jax.ShapeDtypeStruct((2 * C, hw_pad), out_dtype),
        in_specs=[
            pl.BlockSpec(memory_space=pltpu.MemorySpace.VMEM),
            pl.BlockSpec(memory_space=pltpu.MemorySpace.VMEM),
        ],
        out_specs=pl.BlockSpec(memory_space=pltpu.MemorySpace.VMEM),
    )(col_weight, row_weight)

    # Drop lane padding (no-op when h*w % 128 == 0), free contiguous reshape
    # to NCHW, broadcast over batch (fuses into downstream consumers under
    # jit; the PyTorch module returns the same bs-repeated values).
    pos = pos_slab[:, :hw].reshape(2 * C, h, w)
    return jnp.broadcast_to(pos[None], (bs, 2 * C, h, w))


if __name__ == "__main__":
    # Module config (small, consistent with the forward pass).
    num_pos_feats = 32
    row_num_embed = 50
    col_num_embed = 50

    # Deterministic "learned" parameters (nn.init.uniform_ -> U[0, 1)).
    key = jax.random.PRNGKey(0)
    k_row, k_col, k_mask = jax.random.split(key, 3)
    row_weight = jax.random.uniform(k_row, (row_num_embed, num_pos_feats),
                                    dtype=jnp.float32)
    col_weight = jax.random.uniform(k_col, (col_num_embed, num_pos_feats),
                                    dtype=jnp.float32)

    # Example mask: (bs, h, w). Only its shape matters for the forward pass.
    bs, h, w = 2, 16, 16
    mask = (jax.random.uniform(k_mask, (bs, h, w)) > 0.5).astype(jnp.uint8)

    pos = position_embedding_learned(mask, col_weight, row_weight)
    pos = jax.block_until_ready(pos)

    # Pure-JAX reference of the exact PyTorch semantics.
    x_emb = col_weight[:w]                                   # (w, C)
    y_emb = row_weight[:h]                                   # (h, C)
    ref = jnp.concatenate(
        [jnp.broadcast_to(x_emb[None, :, :], (h, w, num_pos_feats)),
         jnp.broadcast_to(y_emb[:, None, :], (h, w, num_pos_feats))],
        axis=-1)                                             # (h, w, 2C)
    ref = jnp.broadcast_to(jnp.transpose(ref, (2, 0, 1))[None],
                           (bs, 2 * num_pos_feats, h, w))

    assert pos.shape == (bs, 2 * num_pos_feats, h, w)
    assert jnp.allclose(pos, ref), "mismatch vs reference"
    print("KERNEL_OK")
</pallas_src>

<mosaic_0001>
module attributes {stable_mosaic.version = 11 : i64} {
  func.func @_pos_embed_kernel(%arg0: memref<50x32xf32, #tpu.memory_space<vmem>>, %arg1: memref<50x32xf32, #tpu.memory_space<vmem>>, %arg2: memref<64x256xf32, #tpu.memory_space<vmem>>) attributes {dimension_semantics = [], scalar_prefetch = 0 : i64, scratch_operands = 0 : i64, tpu.core_type = #tpu.core_type<tc>} {
    %c0 = arith.constant 0 : index
    %c0_0 = arith.constant 0 : index
    %0 = vector.load %arg0[%c0, %c0_0] : memref<50x32xf32, #tpu.memory_space<vmem>>, vector<16x32xf32>
    %c0_1 = arith.constant 0 : index
    %c0_2 = arith.constant 0 : index
    %1 = vector.load %arg1[%c0_1, %c0_2] : memref<50x32xf32, #tpu.memory_space<vmem>>, vector<16x32xf32>
    %2 = tpu.iota {dimensions = array<i32: 1>} : vector<16x256xi32>
    %3 = tpu.iota {dimensions = array<i32: 0>} : vector<16x256xi32>
    %4 = arith.sitofp %2 : vector<16x256xi32> to vector<16x256xf32>
    %cst = arith.constant 2.500000e-01 : f32
    %5 = vector.broadcast %cst : f32 to vector<16x256xf32>
    %6 = arith.addf %4, %5 : vector<16x256xf32>
    %cst_3 = arith.constant 6.250000e-02 : f32
    %7 = vector.broadcast %cst_3 : f32 to vector<16x256xf32>
    %8 = arith.mulf %6, %7 : vector<16x256xf32>
    %9 = math.floor %8 : vector<16x256xf32>
    %10 = arith.fptosi %9 : vector<16x256xf32> to vector<16x256xi32>
    %c16_i32 = arith.constant 16 : i32
    %11 = vector.broadcast %c16_i32 : i32 to vector<16x256xi32>
    %12 = arith.muli %11, %10 : vector<16x256xi32>
    %13 = arith.subi %2, %12 : vector<16x256xi32>
    %14 = arith.cmpi eq, %13, %3 : vector<16x256xi32>
    %c256_i32 = arith.constant 256 : i32
    %15 = vector.broadcast %c256_i32 : i32 to vector<16x256xi32>
    %16 = arith.cmpi slt, %2, %15 : vector<16x256xi32>
    %17 = arith.andi %14, %16 : vector<16x256xi1>
    %18 = arith.extui %17 : vector<16x256xi1> to vector<16x256xi32>
    %19 = arith.sitofp %18 : vector<16x256xi32> to vector<16x256xf32>
    %20 = tpu.iota {dimensions = array<i32: 1>} : vector<16x256xi32>
    %21 = tpu.iota {dimensions = array<i32: 0>} : vector<16x256xi32>
    %c16_i32_4 = arith.constant 16 : i32
    %22 = vector.broadcast %c16_i32_4 : i32 to vector<16x256xi32>
    %23 = arith.muli %21, %22 : vector<16x256xi32>
    %24 = arith.cmpi sge, %20, %23 : vector<16x256xi32>
    %c1_i32 = arith.constant 1 : i32
    %25 = vector.broadcast %c1_i32 : i32 to vector<16x256xi32>
    %26 = arith.addi %21, %25 : vector<16x256xi32>
    %c16_i32_5 = arith.constant 16 : i32
    %27 = vector.broadcast %c16_i32_5 : i32 to vector<16x256xi32>
    %28 = arith.muli %26, %27 : vector<16x256xi32>
    %29 = arith.cmpi slt, %20, %28 : vector<16x256xi32>
    %30 = arith.andi %24, %29 : vector<16x256xi1>
    %31 = arith.extui %30 : vector<16x256xi1> to vector<16x256xi32>
    %32 = arith.sitofp %31 : vector<16x256xi32> to vector<16x256xf32>
    %cst_6 = arith.constant dense<0.000000e+00> : vector<32x256xf32>
    %33 = tpu.matmul %0, %19, %cst_6 {dimension_numbers = #tpu.dot_dimension_numbers<[0], [0], [1], [1], [0, 1, 1, 1], [], []>} : vector<16x32xf32>, vector<16x256xf32>, vector<32x256xf32> -> vector<32x256xf32>
    %cst_7 = arith.constant dense<0.000000e+00> : vector<32x256xf32>
    %34 = tpu.matmul %1, %32, %cst_7 {dimension_numbers = #tpu.dot_dimension_numbers<[0], [0], [1], [1], [0, 1, 1, 1], [], []>} : vector<16x32xf32>, vector<16x256xf32>, vector<32x256xf32> -> vector<32x256xf32>
    %c0_8 = arith.constant 0 : index
    %c0_9 = arith.constant 0 : index
    %35 = vector.load %arg2[%c0_8, %c0_9] : memref<64x256xf32, #tpu.memory_space<vmem>>, vector<32x256xf32>
    tpu.vector_store %arg2[%c0_8, %c0_9], %33 {strides = array<i32>} : memref<64x256xf32, #tpu.memory_space<vmem>>, vector<32x256xf32>,
    %c32 = arith.constant 32 : index
    %c0_10 = arith.constant 0 : index
    %36 = vector.load %arg2[%c32, %c0_10] : memref<64x256xf32, #tpu.memory_space<vmem>>, vector<32x256xf32>
    tpu.vector_store %arg2[%c32, %c0_10], %34 {strides = array<i32>} : memref<64x256xf32, #tpu.memory_space<vmem>>, vector<32x256xf32>,
    return
  }
}

</mosaic_0001>

<llo_original>
// kernel: tpu_custom_call.1
$region0: #{tpu_custom_call.1}
  #allocation0 [shape = 'u32[]', space=smem, size = 0x4, offset = 0x4, fixed_abs, tag = 'smem constant byte address 0x4 - core index']
  #allocation1 [shape = 'u32[72,128]{1,0:T(1,128)}', space=vmem, size = 0x9000, scoped, tag = 'internal scratch']
  %s0 = inlined_call_operand.vmem [shape: f32[50,32], index: 0, kind: input, shape index: {}]
  %s1 = inlined_call_operand.vmem [shape: f32[50,32], index: 1, kind: input, shape index: {}]
  %s2 = inlined_call_operand.hbm [shape: f32[64,256], index: 2, kind: output, shape index: {}]
  %s3 = sld [smem:[#allocation0]]
  $region18: #{tpu_custom_call.1} parent=0
    _
  %s5 = ssub.s32 1, %s3
  %s6 = scalar_select 0, %s5, %s3
  $region1: #{tpu_custom_call.1} parent=0
    #allocation2 [shape = 'u8[65536]{0}', space=vmem, size = 0x10000, scoped, tag = 'output window, operand 0, single buffered']
    #allocation3 [shape = 's32[1]{0}', space=sflag, size = 0x4, scoped, tag = 'scoped memory for tpu_custom_call.1']
    %7 = vsyncpa [#allocation3], 0
    // Predicated region
    $region2: #{tpu_custom_call.1} parent=1 // pred_check
      _
    $region3: #{tpu_custom_call.1} parent=1 // pred_check_branch
      %9 = sbr.rel (0) target = $region5
    $region4: #{tpu_custom_call.1} parent=1 // pred_region
      _
    $region5: #{tpu_custom_call.1} parent=1 // pred_fallthru
      _
    // Predicated region
    $region6: #{tpu_custom_call.1} parent=1 // pred_check
      _
    $region7: #{tpu_custom_call.1} parent=1 // pred_check_branch
      %11 = sbr.rel (0) target = $region9
    $region8: #{tpu_custom_call.1} parent=1 // pred_region
      _
    $region9: #{tpu_custom_call.1} parent=1 // pred_fallthru
      _
    %v12 = vld [vmem:[%s0] sm:$0xff]
    %v13 = vld [vmem:[%s0 + $0x8] sm:$0xff]
    %v14 = vld [vmem:[%s1] sm:$0xff]
    %v15 = vld [vmem:[%s1 + $0x8] sm:$0xff]
    %v16 = vlaneseq
    %v17 = vand.u32 %v16, 127
    %v18 = vadd.s32 %v17, 128
    %v19 = vlaneseq
    %v20 = vshrl.u32 %v19, 7
    %v21 = vadd.s32 %v20, 8
    %v22 = vcvt.s32.f32 %v17
    %v23 = vcvt.s32.f32 %v18
    %v24 = vadd.f32 %v22, 0.25
    %v25 = vadd.f32 %v23, 0.25
    %v26 = vmul.f32 %v24, 0.0625
    %v27 = vmul.f32 %v25, 0.0625
    %v28 = vfloor.f32 %v26
    %v29 = vfloor.f32 %v27
    %v30 = vcvt.f32.s32.to.zero.pseudo %v28
    %v31 = vcvt.f32.s32.to.zero.pseudo %v29
    %v32 = vmul.u32 %v30, 16
    %v33 = vmul.u32 %v31, 16
    %v34 = vsub.s32 %v17, %v32
    %v35 = vsub.s32 %v18, %v33
    %vm36 = vcmp.eq.s32.totalorder %v34, %v20
    %vm37 = vcmp.eq.s32.totalorder %v35, %v20
    %vm38 = vcmp.eq.s32.totalorder %v34, %v21
    %vm39 = vcmp.eq.s32.totalorder %v35, %v21
    %vm40 = vcmp.lt.s32.totalorder %v17, 256
    %vm41 = vcmp.lt.s32.totalorder %v18, 256
    %vm42 = vmand %vm36, %vm40
    %vm43 = vmand %vm37, %vm41
    %vm44 = vmand %vm38, %vm40
    %vm45 = vmand %vm39, %vm41
    %v46 = vsel %vm42, 1, 0
    %v47 = vsel %vm43, 1, 0
    %v48 = vsel %vm44, 1, 0
    %v49 = vsel %vm45, 1, 0
    %v50 = vcvt.s32.f32 %v46
    %v51 = vcvt.s32.f32 %v47
    %v52 = vcvt.s32.f32 %v48
    %v53 = vcvt.s32.f32 %v49
    %v54 = vmul.u32 %v20, 16
    %v55 = vmul.u32 %v21, 16
    %vm56 = vcmp.ge.s32.totalorder %v17, %v54
    %vm57 = vcmp.ge.s32.totalorder %v18, %v54
    %vm58 = vcmp.ge.s32.totalorder %v17, %v55
    %vm59 = vcmp.ge.s32.totalorder %v18, %v55
    %v60 = vadd.s32 %v20, 1
    %v61 = vadd.s32 %v21, 1
    %v62 = vmul.u32 %v60, 16
    %v63 = vmul.u32 %v61, 16
    %vm64 = vcmp.lt.s32.totalorder %v17, %v62
    %vm65 = vcmp.lt.s32.totalorder %v18, %v62
    %vm66 = vcmp.lt.s32.totalorder %v17, %v63
    %vm67 = vcmp.lt.s32.totalorder %v18, %v63
    %vm68 = vmand %vm56, %vm64
    %vm69 = vmand %vm57, %vm65
    %vm70 = vmand %vm58, %vm66
    %vm71 = vmand %vm59, %vm67
    %v72 = vsel %vm68, 1, 0
    %v73 = vsel %vm69, 1, 0
    %v74 = vsel %vm70, 1, 0
    %v75 = vsel %vm71, 1, 0
    %v76 = vcvt.s32.f32 %v72
    %v77 = vcvt.s32.f32 %v73
    %v78 = vcvt.s32.f32 %v74
    %v79 = vcvt.s32.f32 %v75
    %80 = vxpose.xlu0.b32.start [1/16] %v12, 128
    %81 = vxpose.xlu0.b32.cont [2/16] %v13, 128
    %82 = vxpose.xlu0.b32.cont [3/16] 0.0, 128
    %83 = vxpose.xlu0.b32.cont [4/16] 0.0, 128
    %84 = vxpose.xlu0.b32.cont [5/16] 0.0, 128
    %85 = vxpose.xlu0.b32.cont [6/16] 0.0, 128
    %86 = vxpose.xlu0.b32.cont [7/16] 0.0, 128
    %87 = vxpose.xlu0.b32.cont [8/16] 0.0, 128
    %88 = vxpose.xlu0.b32.cont [9/16] 0.0, 128
    %89 = vxpose.xlu0.b32.cont [10/16] 0.0, 128
    %90 = vxpose.xlu0.b32.cont [11/16] 0.0, 128
    %91 = vxpose.xlu0.b32.cont [12/16] 0.0, 128
    %92 = vxpose.xlu0.b32.cont [13/16] 0.0, 128
    %93 = vxpose.xlu0.b32.cont [14/16] 0.0, 128
    %94 = vxpose.xlu0.b32.cont [15/16] 0.0, 128
    %95 = vxpose.xlu0.b32.end [16/16] 0.0, 128
    %v96 = vpop.trf.xlu0
    %v97 = vpop.trf.xlu0
    %v98 = vpop.trf.xlu0
    %v99 = vpop.trf.xlu0
    %v100 = vpop.trf.xlu0
    %v101 = vpop.trf.xlu0
    %v102 = vpop.trf.xlu0
    %v103 = vpop.trf.xlu0
    %v104 = vpop.trf.xlu0
    %v105 = vpop.trf.xlu0
    %v106 = vpop.trf.xlu0
    %v107 = vpop.trf.xlu0
    %v108 = vpop.trf.xlu0
    %v109 = vpop.trf.xlu0
    %v110 = vpop.trf.xlu0
    %v111 = vpop.trf.xlu0
    %vm112 = vcmask 130048
    %v114 = vsel %vm112, %v96, 0
    %v117 = vsel %vm112, %v97, 0
    %v120 = vsel %vm112, %v98, 0
    %v123 = vsel %vm112, %v99, 0
    %125 = vmatpush.msra.mxu0 0.0
    %126 = vmatpush.msra.mxu0 0.0
    %127 = vmatpush.msra.mxu0 0.0
    %128 = vmatpush.msra.mxu0 0.0
    %129 = vmatpush.msra.mxu0 0.0
    %130 = vmatpush.msra.mxu0 0.0
    %131 = vmatpush.msra.mxu0 0.0
    %132 = vmatpush.msra.mxu0 0.0
    %133 = vmatpush.msra.mxu0 0.0
    %134 = vmatpush.msra.mxu0 0.0
    %135 = vmatpush.msra.mxu0 0.0
    %136 = vmatpush.msra.mxu0 0.0
    %137 = vmatpush.msra.mxu0 0.0
    %138 = vmatpush.msra.mxu0 0.0
    %139 = vmatpush.msra.mxu0 %v52
    %140 = vmatpush.msra.mxu0 %v50
    %141 = vmatmul.f32.gmra.mxu0 %v114
    %v142 = vpop.f32.mrf.mxu0
    %v143 = vadd.f32 0.0, %v142
    %144 = vmatmul.f32.gmra.mxu0 %v117
    %v145 = vpop.f32.mrf.mxu0
    %v146 = vadd.f32 0.0, %v145
    %147 = vmatmul.f32.gmra.mxu0 %v120
    %v148 = vpop.f32.mrf.mxu0
    %v149 = vadd.f32 0.0, %v148
    %150 = vmatmul.f32.gmra.mxu0 %v123
    %v151 = vpop.f32.mrf.mxu0
    %v152 = vadd.f32 0.0, %v151
    %153 = vdwg.mxu0
    %154 = vmatpush.msra.mxu0 0.0
    %155 = vmatpush.msra.mxu0 0.0
    %156 = vmatpush.msra.mxu0 0.0
    %157 = vmatpush.msra.mxu0 0.0
    %158 = vmatpush.msra.mxu0 0.0
    %159 = vmatpush.msra.mxu0 0.0
    %160 = vmatpush.msra.mxu0 0.0
    %161 = vmatpush.msra.mxu0 0.0
    %162 = vmatpush.msra.mxu0 0.0
    %163 = vmatpush.msra.mxu0 0.0
    %164 = vmatpush.msra.mxu0 0.0
    %165 = vmatpush.msra.mxu0 0.0
    %166 = vmatpush.msra.mxu0 0.0
    %167 = vmatpush.msra.mxu0 0.0
    %168 = vmatpush.msra.mxu0 %v53
    %169 = vmatpush.msra.mxu0 %v51
    %170 = vmatmul.f32.gmra.mxu0 %v114
    %v171 = vpop.f32.mrf.mxu0
    %v172 = vadd.f32 0.0, %v171
    %173 = vmatmul.f32.gmra.mxu0 %v117
    %v174 = vpop.f32.mrf.mxu0
    %v175 = vadd.f32 0.0, %v174
    %176 = vmatmul.f32.gmra.mxu0 %v120
    %v177 = vpop.f32.mrf.mxu0
    %v178 = vadd.f32 0.0, %v177
    %179 = vmatmul.f32.gmra.mxu0 %v123
    %v180 = vpop.f32.mrf.mxu0
    %v181 = vadd.f32 0.0, %v180
    %182 = vdwg.mxu0
    %183 = vxpose.xlu0.b32.start [1/16] %v14, 128
    %184 = vxpose.xlu0.b32.cont [2/16] %v15, 128
    %185 = vxpose.xlu0.b32.cont [3/16] 0.0, 128
    %186 = vxpose.xlu0.b32.cont [4/16] 0.0, 128
    %187 = vxpose.xlu0.b32.cont [5/16] 0.0, 128
    %188 = vxpose.xlu0.b32.cont [6/16] 0.0, 128
    %189 = vxpose.xlu0.b32.cont [7/16] 0.0, 128
    %190 = vxpose.xlu0.b32.cont [8/16] 0.0, 128
    %191 = vxpose.xlu0.b32.cont [9/16] 0.0, 128
    %192 = vxpose.xlu0.b32.cont [10/16] 0.0, 128
    %193 = vxpose.xlu0.b32.cont [11/16] 0.0, 128
    %194 = vxpose.xlu0.b32.cont [12/16] 0.0, 128
    %195 = vxpose.xlu0.b32.cont [13/16] 0.0, 128
    %196 = vxpose.xlu0.b32.cont [14/16] 0.0, 128
    %197 = vxpose.xlu0.b32.cont [15/16] 0.0, 128
    %198 = vxpose.xlu0.b32.end [16/16] 0.0, 128
    %v199 = vpop.trf.xlu0
    %v200 = vpop.trf.xlu0
    %v201 = vpop.trf.xlu0
    %v202 = vpop.trf.xlu0
    %v203 = vpop.trf.xlu0
    %v204 = vpop.trf.xlu0
    %v205 = vpop.trf.xlu0
    %v206 = vpop.trf.xlu0
    %v207 = vpop.trf.xlu0
    %v208 = vpop.trf.xlu0
    %v209 = vpop.trf.xlu0
    %v210 = vpop.trf.xlu0
    %v211 = vpop.trf.xlu0
    %v212 = vpop.trf.xlu0
    %v213 = vpop.trf.xlu0
    %v214 = vpop.trf.xlu0
    %v216 = vsel %vm112, %v199, 0
    %v219 = vsel %vm112, %v200, 0
    %v222 = vsel %vm112, %v201, 0
    %v225 = vsel %vm112, %v202, 0
    %227 = vmatpush.msra.mxu0 0.0
    %228 = vmatpush.msra.mxu0 0.0
    %229 = vmatpush.msra.mxu0 0.0
    %230 = vmatpush.msra.mxu0 0.0
    %231 = vmatpush.msra.mxu0 0.0
    %232 = vmatpush.msra.mxu0 0.0
    %233 = vmatpush.msra.mxu0 0.0
    %234 = vmatpush.msra.mxu0 0.0
    %235 = vmatpush.msra.mxu0 0.0
    %236 = vmatpush.msra.mxu0 0.0
    %237 = vmatpush.msra.mxu0 0.0
    %238 = vmatpush.msra.mxu0 0.0
    %239 = vmatpush.msra.mxu0 0.0
    %240 = vmatpush.msra.mxu0 0.0
    %241 = vmatpush.msra.mxu0 %v78
    %242 = vmatpush.msra.mxu0 %v76
    %243 = vmatmul.f32.gmra.mxu0 %v216
    %v244 = vpop.f32.mrf.mxu0
    %v245 = vadd.f32 0.0, %v244
    %246 = vmatmul.f32.gmra.mxu0 %v219
    %v247 = vpop.f32.mrf.mxu0
    %v248 = vadd.f32 0.0, %v247
    %249 = vmatmul.f32.gmra.mxu0 %v222
    %v250 = vpop.f32.mrf.mxu0
    %v251 = vadd.f32 0.0, %v250
    %252 = vmatmul.f32.gmra.mxu0 %v225
    %v253 = vpop.f32.mrf.mxu0
    %v254 = vadd.f32 0.0, %v253
    %255 = vdwg.mxu0
    %256 = vmatpush.msra.mxu0 0.0
    %257 = vmatpush.msra.mxu0 0.0
    %258 = vmatpush.msra.mxu0 0.0
    %259 = vmatpush.msra.mxu0 0.0
    %260 = vmatpush.msra.mxu0 0.0
    %261 = vmatpush.msra.mxu0 0.0
    %262 = vmatpush.msra.mxu0 0.0
    %263 = vmatpush.msra.mxu0 0.0
    %264 = vmatpush.msra.mxu0 0.0
    %265 = vmatpush.msra.mxu0 0.0
    %266 = vmatpush.msra.mxu0 0.0
    %267 = vmatpush.msra.mxu0 0.0
    %268 = vmatpush.msra.mxu0 0.0
    %269 = vmatpush.msra.mxu0 0.0
    %270 = vmatpush.msra.mxu0 %v79
    %271 = vmatpush.msra.mxu0 %v77
    %272 = vmatmul.f32.gmra.mxu0 %v216
    %v273 = vpop.f32.mrf.mxu0
    %v274 = vadd.f32 0.0, %v273
    %275 = vmatmul.f32.gmra.mxu0 %v219
    %v276 = vpop.f32.mrf.mxu0
    %v277 = vadd.f32 0.0, %v276
    %278 = vmatmul.f32.gmra.mxu0 %v222
    %v279 = vpop.f32.mrf.mxu0
    %v280 = vadd.f32 0.0, %v279
    %281 = vmatmul.f32.gmra.mxu0 %v225
    %v282 = vpop.f32.mrf.mxu0
    %v283 = vadd.f32 0.0, %v282
    %284 = vdwg.mxu0
    %285 = vst [vmem:[#allocation2] sm:$0xff] %v143
    %286 = vst [vmem:[#allocation2 + $0x8] sm:$0xff] %v172
    %287 = vst [vmem:[#allocation2 + $0x10] sm:$0xff] %v146
    %288 = vst [vmem:[#allocation2 + $0x18] sm:$0xff] %v175
    %289 = vst [vmem:[#allocation2 + $0x20] sm:$0xff] %v149
    %290 = vst [vmem:[#allocation2 + $0x28] sm:$0xff] %v178
    %291 = vst [vmem:[#allocation2 + $0x30] sm:$0xff] %v152
    %292 = vst [vmem:[#allocation2 + $0x38] sm:$0xff] %v181
    %293 = vst [vmem:[#allocation2 + $0x40] sm:$0xff] %v245
    %294 = vst [vmem:[#allocation2 + $0x48] sm:$0xff] %v274
    %295 = vst [vmem:[#allocation2 + $0x50] sm:$0xff] %v248
    %296 = vst [vmem:[#allocation2 + $0x58] sm:$0xff] %v277
    %297 = vst [vmem:[#allocation2 + $0x60] sm:$0xff] %v251
    %298 = vst [vmem:[#allocation2 + $0x68] sm:$0xff] %v280
    %299 = vst [vmem:[#allocation2 + $0x70] sm:$0xff] %v254
    %300 = vst [vmem:[#allocation2 + $0x78] sm:$0xff] %v283
    // Predicated region
    $region10: #{tpu_custom_call.1} parent=1 // pred_check
      _
    $region11: #{tpu_custom_call.1} parent=1 // pred_check_branch
      %302 = sbr.rel (0) target = $region13
    $region12: #{tpu_custom_call.1} parent=1 // pred_region
      %304 = vsyncadd [#allocation3], 0
      %s305 = sshll.u32 [#allocation2], 4
      %s306 = int_to_ptr.vmem [resolvable:$true] %s305
      %s307 = sshll.u32 %s2, 4
      %s308 = int_to_ptr.hbm [resolvable:$true] %s307
      %313 = dma.vmem_to_hbm [thread:$0]  %s306, 2048, %s308, [#allocation3], 256, 256, 16
    $region13: #{tpu_custom_call.1} parent=1 // pred_fallthru
      _
    // Predicated region
    $region14: #{tpu_custom_call.1} parent=1 // pred_check
      _
    $region15: #{tpu_custom_call.1} parent=1 // pred_check_branch
      %315 = sbr.rel (0) target = $region17
    $region16: #{tpu_custom_call.1} parent=1 // pred_region
      %317 = dma.done [#allocation3], 2048
    $region17: #{tpu_custom_call.1} parent=1 // pred_fallthru
      _
    %318 = vsyncpa [#allocation3], 1

</llo_original>
